<compile_context>
chip_gen: v7x
topology: tpu7x:2x2x1
jax: 0.10.0
libtpu: 0.0.40
codegen_flags: <defaults>
</compile_context>

<pallas_src>
import jax
import jax.numpy as jnp
from jax.experimental import pallas as pl
from jax.experimental.pallas import tpu as pltpu


def _round_up(x, m):
    return ((x + m - 1) // m) * m


# --------------------------------------------------------------------------
# Fast path: table resident in VMEM, gather via one-hot matmul on the MXU.
# --------------------------------------------------------------------------
def _prior_mu_onehot_kernel(ids_ref, emb_ref, out_ref):
    """ids_ref: (TB, 1) int32 VMEM; emb_ref: (V, E) VMEM; out_ref: (TB, E)."""
    tb = out_ref.shape[0]
    V = emb_ref.shape[0]
    ids = ids_ref[...]                                            # (TB, 1)
    vocab = jax.lax.broadcasted_iota(jnp.int32, (tb, V), 1)       # (TB, V)
    one_hot = (vocab == ids).astype(emb_ref.dtype)                # (TB, V)
    out_ref[...] = jnp.dot(
        one_hot, emb_ref[...], preferred_element_type=jnp.float32
    ).astype(out_ref.dtype)


# --------------------------------------------------------------------------
# Large-table path: per-row HBM DMAs straight into the output block.
# --------------------------------------------------------------------------
def _prior_mu_gather_kernel(word_ref, emb_hbm, out_ref, sem):
    """word_ref: SMEM int32 (B_padded,) (scalar prefetch);
    emb_hbm: HBM (V, E); out_ref: VMEM (TB, E); sem: single DMA semaphore."""
    tb = out_ref.shape[0]
    base = pl.program_id(0) * tb

    # Issue all row DMAs back-to-back (all in flight), destination = out block.
    copies = []
    for i in range(tb):                        # tb static -> unrolled
        idx = word_ref[base + i]
        cp = pltpu.make_async_copy(
            emb_hbm.at[pl.ds(idx, 1), :],
            out_ref.at[pl.ds(i, 1), :],
            sem,                               # single shared DMA semaphore
        )
        cp.start()
        copies.append(cp)
    for cp in copies:                          # all copies same size -> tb waits
        cp.wait()


# --------------------------------------------------------------------------
# Wrapper = PriorMu.forward: self.emb(word).squeeze()
# --------------------------------------------------------------------------
def prior_mu_forward(word, emb_table, *, tb=128, force_hbm_gather=False):
    word = jnp.asarray(word, jnp.int32)
    lead_shape = word.shape
    flat = word.reshape(-1)

    V, E = emb_table.shape
    itemsize = emb_table.dtype.itemsize

    # Lane-dense output: pad embedding dim to a multiple of 128.
    # TODO(synk): for very large vocabularies this pads the whole table in HBM;
    # acceptable here, revisit if V*E is huge and E % 128 != 0.
    E_pad = _round_up(E, 128)
    if E_pad != E:
        emb_table = jnp.pad(emb_table, ((0, 0), (0, E_pad - E)))

    # Guard against out-of-range ids (unchecked HBM DMA otherwise).
    flat = jnp.clip(flat, 0, V - 1)
    B = flat.shape[0]

    # Dtype-aware batch tile: multiple of sublane packing (8/16/32), capped so
    # the double-buffered (tb, E_pad) output tile stays ~<= 8 MiB total
    # (safe for v5e's 16 MiB scoped VMEM and v7x's 64 MiB physical per TC).
    sub = 8 * max(1, 4 // itemsize)
    max_tile_bytes = 4 * 1024 * 1024
    tb_cap = max(sub, (max_tile_bytes // (E_pad * itemsize)) // sub * sub)
    tb = min(_round_up(max(tb, 1), sub), tb_cap)
    tb = min(tb, _round_up(B, sub))

    nb = pl.cdiv(B, tb)
    Bp = nb * tb
    if Bp != B:
        flat = jnp.concatenate([flat, jnp.zeros((Bp - B,), jnp.int32)])

    small_table = (V * E_pad * itemsize) <= (4 * 1024 * 1024)

    if small_table and not force_hbm_gather:
        # ---- VMEM-resident table + one-hot MXU gather ----
        ids2d = flat.reshape(Bp, 1)
        out = pl.pallas_call(
            _prior_mu_onehot_kernel,
            out_shape=jax.ShapeDtypeStruct((Bp, E_pad), emb_table.dtype),
            grid=(nb,),
            in_specs=[
                pl.BlockSpec((tb, 1), lambda b: (b, 0)),
                pl.BlockSpec((V, E_pad), lambda b: (0, 0)),   # resident table
            ],
            out_specs=pl.BlockSpec((tb, E_pad), lambda b: (b, 0)),
            compiler_params=pltpu.CompilerParams(
                dimension_semantics=("parallel",),
            ),
        )(ids2d, emb_table)
    else:
        # ---- HBM-resident table + per-row DMA gather into the out block ----
        out = pl.pallas_call(
            _prior_mu_gather_kernel,
            out_shape=jax.ShapeDtypeStruct((Bp, E_pad), emb_table.dtype),
            grid_spec=pltpu.PrefetchScalarGridSpec(
                num_scalar_prefetch=1,                        # ids -> SMEM
                grid=(nb,),
                in_specs=[pl.BlockSpec(memory_space=pl.ANY)], # table in HBM
                out_specs=pl.BlockSpec((tb, E_pad), lambda b, ids: (b, 0)),
                scratch_shapes=[pltpu.SemaphoreType.DMA],     # one shared sem
            ),
            compiler_params=pltpu.CompilerParams(
                dimension_semantics=("parallel",),
            ),
        )(flat, emb_table)

    out = out[:B, :E].reshape(lead_shape + (E,))
    # torch .squeeze(): drop every size-1 dim (drops the batch dim when B == 1).
    return jnp.squeeze(out)


if __name__ == "__main__":
    vocab_size = 128
    embed_size = 128
    batch = 12          # not a multiple of the tile -> exercises padding

    key = jax.random.PRNGKey(0)
    k_emb, k_idx = jax.random.split(key)

    # nn.Embedding default init: N(0, 1)
    emb_table = jax.random.normal(k_emb, (vocab_size, embed_size), dtype=jnp.float32)
    word = jax.random.randint(k_idx, (batch,), 0, vocab_size, dtype=jnp.int32)

    ref = jnp.squeeze(jnp.take(emb_table, word, axis=0))

    # 1) Small-table fast path (VMEM-resident table, one-hot MXU gather).
    out_fast = jax.block_until_ready(prior_mu_forward(word, emb_table))
    assert out_fast.shape == ref.shape, (out_fast.shape, ref.shape)
    assert jnp.allclose(out_fast, ref), "fast path mismatch vs reference"

    # 2) HBM-gather path (forced) — per-row DMAs straight into the out block.
    out_gather = jax.block_until_ready(
        prior_mu_forward(word, emb_table, force_hbm_gather=True)
    )
    assert out_gather.shape == ref.shape, (out_gather.shape, ref.shape)
    assert jnp.allclose(out_gather, ref), "gather path mismatch vs reference"

    # 3) batch == 1: .squeeze() drops the batch dim, matching torch semantics.
    one = word[:1]
    ref1 = jnp.squeeze(jnp.take(emb_table, one, axis=0))
    out1 = jax.block_until_ready(prior_mu_forward(one, emb_table))
    assert out1.shape == ref1.shape and jnp.allclose(out1, ref1)

    print("KERNEL_OK")
</pallas_src>

<mosaic_0001>
module attributes {stable_mosaic.version = 11 : i64} {
  func.func @_prior_mu_onehot_kernel(%arg0: i32, %arg1: memref<16x1xi32, #tpu.memory_space<vmem>>, %arg2: memref<128x128xf32, #tpu.memory_space<vmem>>, %arg3: memref<16x128xf32, #tpu.memory_space<vmem>>) attributes {dimension_semantics = [#tpu.dimension_semantics<parallel>], iteration_bounds = array<i64: 1>, scalar_prefetch = 0 : i64, scratch_operands = 0 : i64, tpu.core_type = #tpu.core_type<tc>, window_params = [{transform_indices = @transform_0, window_bounds = array<i64: 16, 1>}, {pipeline_mode = #tpu.pipeline_mode<synchronous>, transform_indices = @transform_1, window_bounds = array<i64: 128, 128>}, {transform_indices = @transform_2, window_bounds = array<i64: 16, 128>}]} {
    %c0 = arith.constant 0 : index
    %c0_0 = arith.constant 0 : index
    %0 = vector.load %arg1[%c0, %c0_0] : memref<16x1xi32, #tpu.memory_space<vmem>>, vector<16x1xi32>
    %1 = tpu.iota {dimensions = array<i32: 1>} : vector<16x128xi32>
    %2 = vector.broadcast %0 : vector<16x1xi32> to vector<16x128xi32>
    %3 = arith.cmpi eq, %1, %2 : vector<16x128xi32>
    %4 = arith.extui %3 : vector<16x128xi1> to vector<16x128xi32>
    %5 = arith.sitofp %4 : vector<16x128xi32> to vector<16x128xf32>
    %c0_1 = arith.constant 0 : index
    %c0_2 = arith.constant 0 : index
    %6 = vector.load %arg2[%c0_1, %c0_2] : memref<128x128xf32, #tpu.memory_space<vmem>>, vector<128x128xf32>
    %cst = arith.constant dense<0.000000e+00> : vector<16x128xf32>
    %7 = tpu.matmul %5, %6, %cst {dimension_numbers = #tpu.dot_dimension_numbers<[1], [0], [0], [1], [0, 0, 1, 1], [], []>} : vector<16x128xf32>, vector<128x128xf32>, vector<16x128xf32> -> vector<16x128xf32>
    %c0_3 = arith.constant 0 : index
    %c0_4 = arith.constant 0 : index
    %8 = vector.load %arg3[%c0_3, %c0_4] : memref<16x128xf32, #tpu.memory_space<vmem>>, vector<16x128xf32>
    tpu.vector_store %arg3[%c0_3, %c0_4], %7 {strides = array<i32>} : memref<16x128xf32, #tpu.memory_space<vmem>>, vector<16x128xf32>,
    return
  }
  func.func @transform_0(%arg0: i32) -> (i32, i32) {
    %c0_i32 = arith.constant 0 : i32
    %c0_i32_0 = arith.constant 0 : i32
    return %arg0, %c0_i32 : i32, i32
  }
  func.func @transform_1(%arg0: i32) -> (i32, i32) {
    %c0_i32 = arith.constant 0 : i32
    %c0_i32_0 = arith.constant 0 : i32
    %c0_i32_1 = arith.constant 0 : i32
    return %c0_i32, %c0_i32_0 : i32, i32
  }
  func.func @transform_2(%arg0: i32) -> (i32, i32) {
    %c0_i32 = arith.constant 0 : i32
    %c0_i32_0 = arith.constant 0 : i32
    return %arg0, %c0_i32 : i32, i32
  }
}

</mosaic_0001>

<llo_original>
// kernel: tpu_custom_call.1
$region0: #{tpu_custom_call.1}
  #allocation0 [shape = 'u32[]', space=smem, size = 0x4, offset = 0x4, fixed_abs, tag = 'smem constant byte address 0x4 - core index']
  #allocation1 [shape = 'u32[144,128]{1,0:T(1,128)}', space=vmem, size = 0x12000, scoped, tag = 'internal scratch']
  %s0 = inlined_call_operand.vmem [shape: s32[16,1], index: 0, kind: input, shape index: {}]
  %s1 = inlined_call_operand.hbm [shape: f32[128,128], index: 1, kind: input, shape index: {}]
  %s2 = inlined_call_operand.hbm [shape: f32[16,128], index: 2, kind: output, shape index: {}]
  %s3 = sld [smem:[#allocation0]]
  $region22: #{tpu_custom_call.1} parent=0
    _
  %s5 = ssub.s32 1, %s3
  %s6 = scalar_select 0, %s5, %s3
  $region1: #{tpu_custom_call.1} parent=0
    #allocation2 [shape = 'u8[65536]{0}', space=vmem, size = 0x10000, scoped, tag = 'input window, operand 1, single buffered']
    #allocation3 [shape = 's32[1]{0}', space=sflag, size = 0x4, scoped, tag = 'scoped memory for tpu_custom_call.1']
    #allocation4 [shape = 's32[1]{0}', space=sflag, size = 0x4, scoped, tag = 'scoped memory for tpu_custom_call.1']
    #allocation5 [shape = 'u8[8192]{0}', space=vmem, size = 0x2000, scoped, tag = 'output window, operand 0, single buffered']
    %7 = vsyncpa [#allocation3], 0
    %8 = vsyncpa [#allocation4], 0
    // Predicated region
    $region2: #{tpu_custom_call.1} parent=1 // pred_check
      _
    $region3: #{tpu_custom_call.1} parent=1 // pred_check_branch
      %10 = sbr.rel (0) target = $region5
    $region4: #{tpu_custom_call.1} parent=1 // pred_region
      _
    $region5: #{tpu_custom_call.1} parent=1 // pred_fallthru
      _
    // Predicated region
    $region6: #{tpu_custom_call.1} parent=1 // pred_check
      _
    $region7: #{tpu_custom_call.1} parent=1 // pred_check_branch
      %12 = sbr.rel (0) target = $region9
    $region8: #{tpu_custom_call.1} parent=1 // pred_region
      %s14 = ssub.s32 2048, 2048
      %15 = vsyncadd [#allocation3], %s14
      %s16 = sshll.u32 [#allocation2], 4
      %s17 = int_to_ptr.vmem [resolvable:$true] %s16
      %22 = dma.hbm_to_vmem [thread:$0]  %s1, 2048, %s17, [#allocation3], 128, 128, 8
    $region9: #{tpu_custom_call.1} parent=1 // pred_fallthru
      _
    // Predicated region
    $region10: #{tpu_custom_call.1} parent=1 // pred_check
      _
    $region11: #{tpu_custom_call.1} parent=1 // pred_check_branch
      %24 = sbr.rel (0) target = $region13
    $region12: #{tpu_custom_call.1} parent=1 // pred_region
      %25 = dma.done [#allocation3], 2048
    $region13: #{tpu_custom_call.1} parent=1 // pred_fallthru
      _
    %v26 = vld [vmem:[%s0] sm:$0xff]
    %v27 = vld [vmem:[%s0 + $0x8] sm:$0xff]
    %v28 = vlaneseq
    %v29 = vand.u32 %v28, 127
    %30 = vset.pattern.permute.xlu0 0
    %31 = vperm.xlu0 %30, %v26
    %v32 = vpop.permute.xlu0 %31
    %33 = vset.pattern.permute.xlu0 0
    %34 = vperm.xlu0 %33, %v27
    %v35 = vpop.permute.xlu0 %34
    %vm36 = vcmp.eq.s32.totalorder %v29, %v32
    %vm37 = vcmp.eq.s32.totalorder %v29, %v35
    %v38 = vsel %vm36, 1, 0
    %v39 = vsel %vm37, 1, 0
    %v40 = vcvt.s32.f32 %v38
    %v41 = vcvt.s32.f32 %v39
    %v42 = vld [vmem:[#allocation2] sm:$0xff]
    %v43 = vld [vmem:[#allocation2 + $0x8] sm:$0xff]
    %v44 = vld [vmem:[#allocation2 + $0x10] sm:$0xff]
    %v45 = vld [vmem:[#allocation2 + $0x18] sm:$0xff]
    %v46 = vld [vmem:[#allocation2 + $0x20] sm:$0xff]
    %v47 = vld [vmem:[#allocation2 + $0x28] sm:$0xff]
    %v48 = vld [vmem:[#allocation2 + $0x30] sm:$0xff]
    %v49 = vld [vmem:[#allocation2 + $0x38] sm:$0xff]
    %v50 = vld [vmem:[#allocation2 + $0x40] sm:$0xff]
    %v51 = vld [vmem:[#allocation2 + $0x48] sm:$0xff]
    %v52 = vld [vmem:[#allocation2 + $0x50] sm:$0xff]
    %v53 = vld [vmem:[#allocation2 + $0x58] sm:$0xff]
    %v54 = vld [vmem:[#allocation2 + $0x60] sm:$0xff]
    %v55 = vld [vmem:[#allocation2 + $0x68] sm:$0xff]
    %v56 = vld [vmem:[#allocation2 + $0x70] sm:$0xff]
    %v57 = vld [vmem:[#allocation2 + $0x78] sm:$0xff]
    %58 = vmatprep.subr.mxu0 0.0
    %59 = vmatpush1.msra.mxu0 %v42
    %60 = vmatprep.subr.mxu0 0.0
    %61 = vmatpush1.msra.mxu0 %v43
    %62 = vmatprep.subr.mxu0 0.0
    %63 = vmatpush1.msra.mxu0 %v44
    %64 = vmatprep.subr.mxu0 0.0
    %65 = vmatpush1.msra.mxu0 %v45
    %66 = vmatprep.subr.mxu0 0.0
    %67 = vmatpush1.msra.mxu0 %v46
    %68 = vmatprep.subr.mxu0 0.0
    %69 = vmatpush1.msra.mxu0 %v47
    %70 = vmatprep.subr.mxu0 0.0
    %71 = vmatpush1.msra.mxu0 %v48
    %72 = vmatprep.subr.mxu0 0.0
    %73 = vmatpush1.msra.mxu0 %v49
    %74 = vmatprep.subr.mxu0 0.0
    %75 = vmatpush1.msra.mxu0 %v50
    %76 = vmatprep.subr.mxu0 0.0
    %77 = vmatpush1.msra.mxu0 %v51
    %78 = vmatprep.subr.mxu0 0.0
    %79 = vmatpush1.msra.mxu0 %v52
    %80 = vmatprep.subr.mxu0 0.0
    %81 = vmatpush1.msra.mxu0 %v53
    %82 = vmatprep.subr.mxu0 0.0
    %83 = vmatpush1.msra.mxu0 %v54
    %84 = vmatprep.subr.mxu0 0.0
    %85 = vmatpush1.msra.mxu0 %v55
    %86 = vmatprep.subr.mxu0 0.0
    %87 = vmatpush1.msra.mxu0 %v56
    %88 = vmatprep.subr.mxu0 0.0
    %89 = vmatpush1.msra.mxu0 %v57
    %90 = vmatprep.subr.mxu0 0.0
    %91 = vmatpush1.msra.mxu0 0.0
    %92 = vmatprep.subr.mxu0 0.0
    %93 = vmatpush1.msra.mxu0 0.0
    %94 = vmatprep.subr.mxu0 0.0
    %95 = vmatpush1.msra.mxu0 0.0
    %96 = vmatprep.subr.mxu0 0.0
    %97 = vmatpush1.msra.mxu0 0.0
    %98 = vmatprep.subr.mxu0 0.0
    %99 = vmatpush1.msra.mxu0 0.0
    %100 = vmatprep.subr.mxu0 0.0
    %101 = vmatpush1.msra.mxu0 0.0
    %102 = vmatprep.subr.mxu0 0.0
    %103 = vmatpush1.msra.mxu0 0.0
    %104 = vmatprep.subr.mxu0 0.0
    %105 = vmatpush1.msra.mxu0 0.0
    %106 = vmatprep.subr.mxu0 0.0
    %107 = vmatpush1.msra.mxu0 0.0
    %108 = vmatprep.subr.mxu0 0.0
    %109 = vmatpush1.msra.mxu0 0.0
    %110 = vmatprep.subr.mxu0 0.0
    %111 = vmatpush1.msra.mxu0 0.0
    %112 = vmatprep.subr.mxu0 0.0
    %113 = vmatpush1.msra.mxu0 0.0
    %114 = vmatprep.subr.mxu0 0.0
    %115 = vmatpush1.msra.mxu0 0.0
    %116 = vmatprep.subr.mxu0 0.0
    %117 = vmatpush1.msra.mxu0 0.0
    %118 = vmatprep.subr.mxu0 0.0
    %119 = vmatpush1.msra.mxu0 0.0
    %120 = vmatprep.subr.mxu0 0.0
    %121 = vmatpush1.msra.mxu0 0.0
    %122 = vmatprep.mubr.f32.mxu0 0.0
    %123 = vmatmul.mubr.f32.gmra.mrb[0].mxu0 %v40
    %v124 = vpop.f32.mrb[0].mxu0
    %v125 = vadd.f32 0.0, %v124
    %v126 = vpop.f32.mrb[0].mxu0
    %127 = vmatprep.mubr.f32.mxu0 0.0
    %128 = vmatmul.mubr.f32.gmra.mrb[0].mxu0 %v41
    %v129 = vpop.f32.mrb[0].mxu0
    %v130 = vadd.f32 0.0, %v129
    %v131 = vpop.f32.mrb[0].mxu0
    %132 = vdwg.mxu0
    %133 = vst [vmem:[#allocation5] sm:$0xff] %v125
    %134 = vst [vmem:[#allocation5 + $0x8] sm:$0xff] %v130
    // Predicated region
    $region14: #{tpu_custom_call.1} parent=1 // pred_check
      _
    $region15: #{tpu_custom_call.1} parent=1 // pred_check_branch
      %136 = sbr.rel (0) target = $region17
    $region16: #{tpu_custom_call.1} parent=1 // pred_region
      %s138 = ssub.s32 256, 256
      %139 = vsyncadd [#allocation4], %s138
      %s140 = sshll.u32 [#allocation5], 4
      %s141 = int_to_ptr.vmem [resolvable:$true] %s140
      %146 = dma.vmem_to_hbm [thread:$0]  %s141, 256, %s2, [#allocation4], 128, 128, 8
    $region17: #{tpu_custom_call.1} parent=1 // pred_fallthru
      _
    // Predicated region
    $region18: #{tpu_custom_call.1} parent=1 // pred_check
      _
    $region19: #{tpu_custom_call.1} parent=1 // pred_check_branch
      %148 = sbr.rel (0) target = $region21
    $region20: #{tpu_custom_call.1} parent=1 // pred_region
      %149 = dma.done [#allocation4], 256
    $region21: #{tpu_custom_call.1} parent=1 // pred_fallthru
      _
    %150 = vsyncpa [#allocation3], 1
    %151 = vsyncpa [#allocation4], 1

</llo_original>
